<compile_context>
chip_gen: v7x
topology: tpu7x:2x2x1
jax: 0.10.0
libtpu: 0.0.40
codegen_flags: <defaults>
</compile_context>

<pallas_src>
import jax
import jax.numpy as jnp
from jax.experimental import pallas as pl
from jax.experimental.pallas import tpu as pltpu


def _round_up(n, m):
    return ((n + m - 1) // m) * m


def _mlp_kernel(x_ref, w1_ref, b1_ref, w2_ref, b2_ref, o_ref):
    # Layer 1: x @ W1 + b1 -> LeakyReLU(negative_slope=0.01, PyTorch default).
    h = jnp.dot(x_ref[...], w1_ref[...],
                preferred_element_type=jnp.float32,
                precision=jax.lax.Precision.HIGHEST)
    h = h + b1_ref[...]
    h = jnp.where(h > 0, h, 0.01 * h)
    # Layer 2: h @ W2 + b2, stored unpadded (lane width == out_dim).
    y = jnp.dot(h, w2_ref[...],
                preferred_element_type=jnp.float32,
                precision=jax.lax.Precision.HIGHEST)
    o_ref[...] = (y + b2_ref[...]).astype(o_ref.dtype)


def dqn_qr_forward(x, w1, b1, w2, b2, num_actions, num_quant, batch_tile=2048):
    """x: (B, len_state) f32. w1: (len_state, H), b1: (1, H),
    w2: (H, num_actions*num_quant), b2: (1, num_actions*num_quant).
    Returns (B, num_actions, num_quant) f32."""
    B, K = x.shape
    H = w1.shape[1]
    out_dim = num_actions * num_quant

    # Sublane-align the batch only (pad <= 7 rows; no full-array pad for big B).
    B8 = _round_up(B, 8)

    # Batch tile: multiple of 8, capped at batch_tile.  If the whole batch
    # would be one grid step but is splittable, halve the tile so the grid has
    # >= 2 steps (v7x has 2 TensorCores; extra step costs ~0.35us elsewhere).
    TB = min(batch_tile, B8)
    if B8 > 8 and pl.cdiv(B8, TB) < 2:
        TB = max(8, _round_up(pl.cdiv(B8, 2), 8))
    grid = (pl.cdiv(B8, TB),)

    xp = jnp.pad(x, ((0, B8 - B), (0, 0))) if B8 != B else x

    cost = pl.CostEstimate(
        flops=2 * B8 * (K * H + H * out_dim),
        transcendentals=0,
        bytes_accessed=4 * (B8 * K + B8 * out_dim
                            + K * H + H * out_dim + H + out_dim),
    )

    y = pl.pallas_call(
        _mlp_kernel,
        out_shape=jax.ShapeDtypeStruct((B8, out_dim), jnp.float32),
        grid=grid,
        in_specs=[
            pl.BlockSpec((TB, K), lambda i: (i, 0)),        # x: steps along batch
            pl.BlockSpec((K, H), lambda i: (0, 0)),         # W1: VMEM-resident
            pl.BlockSpec((1, H), lambda i: (0, 0)),         # b1: VMEM-resident
            pl.BlockSpec((H, out_dim), lambda i: (0, 0)),   # W2: VMEM-resident
            pl.BlockSpec((1, out_dim), lambda i: (0, 0)),   # b2: VMEM-resident
        ],
        out_specs=pl.BlockSpec((TB, out_dim), lambda i: (i, 0)),
        compiler_params=pltpu.CompilerParams(
            dimension_semantics=("parallel",)),
        cost_estimate=cost,
    )(xp, w1, b1, w2, b2)

    if B8 != B:
        y = y[:B]   # drop at most 7 alignment-pad rows
    # Contiguous (B, A*Q) -> (B, A, Q): layout-preserving reshape, no extra pass.
    return y.reshape(-1, num_actions, num_quant)


def init_linear_params(key, in_features, out_features):
    """Deterministic init mimicking torch.nn.Linear defaults
    (uniform in [-1/sqrt(fan_in), 1/sqrt(fan_in)])."""
    kw, kb = jax.random.split(key)
    bound = 1.0 / jnp.sqrt(jnp.float32(in_features))
    # Stored as (in, out) so the kernel computes x @ W (== PyTorch x @ W.T).
    w = jax.random.uniform(kw, (in_features, out_features), jnp.float32,
                           minval=-bound, maxval=bound)
    b = jax.random.uniform(kb, (1, out_features), jnp.float32,
                           minval=-bound, maxval=bound)
    return w, b


def _reference(x, w1, b1, w2, b2, num_actions, num_quant):
    h = jnp.dot(x, w1, precision=jax.lax.Precision.HIGHEST) + b1
    h = jnp.where(h > 0, h, 0.01 * h)
    y = jnp.dot(h, w2, precision=jax.lax.Precision.HIGHEST) + b2
    return y.reshape(-1, num_actions, num_quant)


if __name__ == "__main__":
    # Small, module-consistent shapes (module default hidden=256; kept small).
    len_state = 16
    hidden_dim = 32
    num_actions = 4
    num_quant = 8

    key = jax.random.PRNGKey(0)
    k_x, k_l1, k_l2 = jax.random.split(key, 3)

    w1, b1 = init_linear_params(k_l1, len_state, hidden_dim)
    w2, b2 = init_linear_params(k_l2, hidden_dim, num_actions * num_quant)

    ok = True
    for batch in (8, 10):   # 10 exercises row padding + the 2-step grid path
        x = jax.random.normal(jax.random.fold_in(k_x, batch),
                              (batch, len_state), jnp.float32)
        y = dqn_qr_forward(x, w1, b1, w2, b2, num_actions, num_quant)
        y = jax.block_until_ready(y)

        y_ref = _reference(x, w1, b1, w2, b2, num_actions, num_quant)
        assert y.shape == (batch, num_actions, num_quant)
        # Full-f32 math in the kernel -> tight tolerance.
        if not jnp.allclose(y, y_ref, atol=1e-4, rtol=1e-4):
            ok = False

    if ok:
        print("KERNEL_OK")
</pallas_src>

<mosaic_0001>
module attributes {stable_mosaic.version = 11 : i64} {
  func.func @_mlp_kernel(%arg0: i32, %arg1: memref<8x16xf32, #tpu.memory_space<vmem>>, %arg2: memref<16x32xf32, #tpu.memory_space<vmem>>, %arg3: memref<1x32xf32, #tpu.memory_space<vmem>>, %arg4: memref<32x32xf32, #tpu.memory_space<vmem>>, %arg5: memref<1x32xf32, #tpu.memory_space<vmem>>, %arg6: memref<8x32xf32, #tpu.memory_space<vmem>>) attributes {dimension_semantics = [#tpu.dimension_semantics<parallel>], iteration_bounds = array<i64: 1>, scalar_prefetch = 0 : i64, scratch_operands = 0 : i64, tpu.core_type = #tpu.core_type<tc>, window_params = [{transform_indices = @transform_0, window_bounds = array<i64: 8, 16>}, {pipeline_mode = #tpu.pipeline_mode<synchronous>, transform_indices = @transform_1, window_bounds = array<i64: 16, 32>}, {pipeline_mode = #tpu.pipeline_mode<synchronous>, transform_indices = @transform_2, window_bounds = array<i64: 1, 32>}, {pipeline_mode = #tpu.pipeline_mode<synchronous>, transform_indices = @transform_3, window_bounds = array<i64: 32, 32>}, {pipeline_mode = #tpu.pipeline_mode<synchronous>, transform_indices = @transform_4, window_bounds = array<i64: 1, 32>}, {transform_indices = @transform_5, window_bounds = array<i64: 8, 32>}]} {
    %c0 = arith.constant 0 : index
    %c0_0 = arith.constant 0 : index
    %0 = vector.load %arg1[%c0, %c0_0] : memref<8x16xf32, #tpu.memory_space<vmem>>, vector<8x16xf32>
    %c0_1 = arith.constant 0 : index
    %c0_2 = arith.constant 0 : index
    %1 = vector.load %arg2[%c0_1, %c0_2] : memref<16x32xf32, #tpu.memory_space<vmem>>, vector<16x32xf32>
    %cst = arith.constant dense<0.000000e+00> : vector<8x32xf32>
    %2 = tpu.matmul %0, %1, %cst {dimension_numbers = #tpu.dot_dimension_numbers<[1], [0], [0], [1], [0, 0, 1, 1], [], []>, precision = #tpu.contract_precision<fp32>} : vector<8x16xf32>, vector<16x32xf32>, vector<8x32xf32> -> vector<8x32xf32>
    %c0_3 = arith.constant 0 : index
    %c0_4 = arith.constant 0 : index
    %3 = vector.load %arg3[%c0_3, %c0_4] : memref<1x32xf32, #tpu.memory_space<vmem>>, vector<1x32xf32>
    %4 = vector.broadcast %3 : vector<1x32xf32> to vector<8x32xf32>
    %5 = arith.addf %2, %4 : vector<8x32xf32>
    %cst_5 = arith.constant 0.000000e+00 : f32
    %6 = vector.broadcast %cst_5 : f32 to vector<8x32xf32>
    %7 = arith.cmpf ogt, %5, %6 : vector<8x32xf32>
    %cst_6 = arith.constant 0.00999999977 : f32
    %8 = vector.broadcast %cst_6 : f32 to vector<8x32xf32>
    %9 = arith.mulf %8, %5 : vector<8x32xf32>
    %10 = arith.select %7, %5, %9 : vector<8x32xi1>, vector<8x32xf32>
    %c0_7 = arith.constant 0 : index
    %c0_8 = arith.constant 0 : index
    %11 = vector.load %arg4[%c0_7, %c0_8] : memref<32x32xf32, #tpu.memory_space<vmem>>, vector<32x32xf32>
    %cst_9 = arith.constant dense<0.000000e+00> : vector<8x32xf32>
    %12 = tpu.matmul %10, %11, %cst_9 {dimension_numbers = #tpu.dot_dimension_numbers<[1], [0], [0], [1], [0, 0, 1, 1], [], []>, precision = #tpu.contract_precision<fp32>} : vector<8x32xf32>, vector<32x32xf32>, vector<8x32xf32> -> vector<8x32xf32>
    %c0_10 = arith.constant 0 : index
    %c0_11 = arith.constant 0 : index
    %13 = vector.load %arg5[%c0_10, %c0_11] : memref<1x32xf32, #tpu.memory_space<vmem>>, vector<1x32xf32>
    %14 = vector.broadcast %13 : vector<1x32xf32> to vector<8x32xf32>
    %15 = arith.addf %12, %14 : vector<8x32xf32>
    %c0_12 = arith.constant 0 : index
    %c0_13 = arith.constant 0 : index
    %16 = vector.load %arg6[%c0_12, %c0_13] : memref<8x32xf32, #tpu.memory_space<vmem>>, vector<8x32xf32>
    tpu.vector_store %arg6[%c0_12, %c0_13], %15 {strides = array<i32>} : memref<8x32xf32, #tpu.memory_space<vmem>>, vector<8x32xf32>,
    return
  }
  func.func @transform_0(%arg0: i32) -> (i32, i32) {
    %c0_i32 = arith.constant 0 : i32
    %c0_i32_0 = arith.constant 0 : i32
    return %arg0, %c0_i32 : i32, i32
  }
  func.func @transform_1(%arg0: i32) -> (i32, i32) {
    %c0_i32 = arith.constant 0 : i32
    %c0_i32_0 = arith.constant 0 : i32
    %c0_i32_1 = arith.constant 0 : i32
    return %c0_i32, %c0_i32_0 : i32, i32
  }
  func.func @transform_2(%arg0: i32) -> (i32, i32) {
    %c0_i32 = arith.constant 0 : i32
    %c0_i32_0 = arith.constant 0 : i32
    %c0_i32_1 = arith.constant 0 : i32
    return %c0_i32, %c0_i32_0 : i32, i32
  }
  func.func @transform_3(%arg0: i32) -> (i32, i32) {
    %c0_i32 = arith.constant 0 : i32
    %c0_i32_0 = arith.constant 0 : i32
    %c0_i32_1 = arith.constant 0 : i32
    return %c0_i32, %c0_i32_0 : i32, i32
  }
  func.func @transform_4(%arg0: i32) -> (i32, i32) {
    %c0_i32 = arith.constant 0 : i32
    %c0_i32_0 = arith.constant 0 : i32
    %c0_i32_1 = arith.constant 0 : i32
    return %c0_i32, %c0_i32_0 : i32, i32
  }
  func.func @transform_5(%arg0: i32) -> (i32, i32) {
    %c0_i32 = arith.constant 0 : i32
    %c0_i32_0 = arith.constant 0 : i32
    return %arg0, %c0_i32 : i32, i32
  }
}

</mosaic_0001>

<llo_original>
// kernel: tpu_custom_call.1
$region0: #{tpu_custom_call.1}
  #allocation0 [shape = 'u32[]', space=smem, size = 0x4, offset = 0x4, fixed_abs, tag = 'smem constant byte address 0x4 - core index']
  #allocation1 [shape = 'u32[144,128]{1,0:T(1,128)}', space=vmem, size = 0x12000, scoped, tag = 'internal scratch']
  %s0 = inlined_call_operand.hbm [shape: f32[8,16], index: 0, kind: input, shape index: {}]
  %s1 = inlined_call_operand.hbm [shape: f32[16,32], index: 1, kind: input, shape index: {}]
  %s2 = inlined_call_operand.vmem [shape: f32[1,32], index: 2, kind: input, shape index: {}]
  %s3 = inlined_call_operand.hbm [shape: f32[32,32], index: 3, kind: input, shape index: {}]
  %s4 = inlined_call_operand.vmem [shape: f32[1,32], index: 4, kind: input, shape index: {}]
  %s5 = inlined_call_operand.hbm [shape: f32[8,32], index: 5, kind: output, shape index: {}]
  %s6 = sld [smem:[#allocation0]]
  $region42: #{tpu_custom_call.1} parent=0
    _
  %s8 = ssub.s32 1, %s6
  %s9 = scalar_select 0, %s8, %s6
  $region1: #{tpu_custom_call.1} parent=0
    #allocation2 [shape = 'u8[4096]{0}', space=vmem, size = 0x1000, scoped, tag = 'input window, operand 0, single buffered']
    #allocation3 [shape = 's32[1]{0}', space=sflag, size = 0x4, scoped, tag = 'scoped memory for tpu_custom_call.1']
    #allocation4 [shape = 's32[1]{0}', space=sflag, size = 0x4, scoped, tag = 'scoped memory for tpu_custom_call.1']
    #allocation5 [shape = 'u8[8192]{0}', space=vmem, size = 0x2000, scoped, tag = 'input window, operand 1, single buffered']
    #allocation6 [shape = 's32[1]{0}', space=sflag, size = 0x4, scoped, tag = 'scoped memory for tpu_custom_call.1']
    #allocation7 [shape = 'u8[16384]{0}', space=vmem, size = 0x4000, scoped, tag = 'input window, operand 3, single buffered']
    #allocation8 [shape = 'u8[4096]{0}', space=vmem, size = 0x1000, scoped, tag = 'output window, operand 0, single buffered']
    %10 = vsyncpa [#allocation3], 0
    %11 = vsyncpa [#allocation6], 0
    %12 = vsyncpa [#allocation4], 0
    // Predicated region
    $region2: #{tpu_custom_call.1} parent=1 // pred_check
      _
    $region3: #{tpu_custom_call.1} parent=1 // pred_check_branch
      %14 = sbr.rel (0) target = $region5
    $region4: #{tpu_custom_call.1} parent=1 // pred_region
      %s16 = ssub.s32 128, 128
      %17 = vsyncadd [#allocation3], %s16
      %s19 = sshll.u32 [#allocation2], 4
      %s20 = int_to_ptr.vmem [resolvable:$true] %s19
      %22 = dma.hbm_to_vmem [thread:$0]  %s0, 128, %s20, [#allocation3]
    $region5: #{tpu_custom_call.1} parent=1 // pred_fallthru
      _
    // Predicated region
    $region6: #{tpu_custom_call.1} parent=1 // pred_check
      _
    $region7: #{tpu_custom_call.1} parent=1 // pred_check_branch
      %24 = sbr.rel (0) target = $region9
    $region8: #{tpu_custom_call.1} parent=1 // pred_region
      %s26 = ssub.s32 256, 256
      %27 = vsyncadd [#allocation6], %s26
      %s28 = sshll.u32 [#allocation5], 4
      %s29 = int_to_ptr.vmem [resolvable:$true] %s28
      %34 = dma.hbm_to_vmem [thread:$0]  %s1, 256, %s29, [#allocation6], 128, 128, 8
    $region9: #{tpu_custom_call.1} parent=1 // pred_fallthru
      _
    // Predicated region
    $region10: #{tpu_custom_call.1} parent=1 // pred_check
      _
    $region11: #{tpu_custom_call.1} parent=1 // pred_check_branch
      %36 = sbr.rel (0) target = $region13
    $region12: #{tpu_custom_call.1} parent=1 // pred_region
      _
    $region13: #{tpu_custom_call.1} parent=1 // pred_fallthru
      _
    // Predicated region
    $region14: #{tpu_custom_call.1} parent=1 // pred_check
      _
    $region15: #{tpu_custom_call.1} parent=1 // pred_check_branch
      %38 = sbr.rel (0) target = $region17
    $region16: #{tpu_custom_call.1} parent=1 // pred_region
      %s40 = ssub.s32 512, 512
      %41 = vsyncadd [#allocation6], %s40
      %s42 = sshll.u32 [#allocation7], 4
      %s43 = int_to_ptr.vmem [resolvable:$true] %s42
      %48 = dma.hbm_to_vmem [thread:$0]  %s3, 512, %s43, [#allocation6], 128, 128, 8
    $region17: #{tpu_custom_call.1} parent=1 // pred_fallthru
      _
    // Predicated region
    $region18: #{tpu_custom_call.1} parent=1 // pred_check
      _
    $region19: #{tpu_custom_call.1} parent=1 // pred_check_branch
      %50 = sbr.rel (0) target = $region21
    $region20: #{tpu_custom_call.1} parent=1 // pred_region
      _
    $region21: #{tpu_custom_call.1} parent=1 // pred_fallthru
      _
    // Predicated region
    $region22: #{tpu_custom_call.1} parent=1 // pred_check
      _
    $region23: #{tpu_custom_call.1} parent=1 // pred_check_branch
      %52 = sbr.rel (0) target = $region25
    $region24: #{tpu_custom_call.1} parent=1 // pred_region
      %53 = dma.done [#allocation3], 128
    $region25: #{tpu_custom_call.1} parent=1 // pred_fallthru
      _
    // Predicated region
    $region26: #{tpu_custom_call.1} parent=1 // pred_check
      _
    $region27: #{tpu_custom_call.1} parent=1 // pred_check_branch
      %55 = sbr.rel (0) target = $region29
    $region28: #{tpu_custom_call.1} parent=1 // pred_region
      %56 = dma.done [#allocation6], 256
    $region29: #{tpu_custom_call.1} parent=1 // pred_fallthru
      _
    // Predicated region
    $region30: #{tpu_custom_call.1} parent=1 // pred_check
      _
    $region31: #{tpu_custom_call.1} parent=1 // pred_check_branch
      %58 = sbr.rel (0) target = $region33
    $region32: #{tpu_custom_call.1} parent=1 // pred_region
      %59 = dma.done [#allocation6], 512
    $region33: #{tpu_custom_call.1} parent=1 // pred_fallthru
      _
    %v60 = vld [vmem:[#allocation2] sm:$0xff]
    %v61 = vld [vmem:[#allocation5] sm:$0xff]
    %v62 = vld [vmem:[#allocation5 + $0x8] sm:$0xff]
    %v63 = vld [vmem:[%s2] sm:$0x1]
    %v65 = vlaneseq
    %v66 = vshrl.u32 %v65, 7
    %v67 = vsub.s32 0, %v66
    %v68 = vrot.slane %v63, %v67
    %vm70 = vcmask 130048
    %v72 = vsel %vm70, %v60, 0
    %74 = vmatprep.subr.mxu0 0.0
    %v75 = vand.u32 %v61, 4294901760
    %76 = vmatpush1.msra.mxu0 %v75
    %77 = vmatprep.subr.mxu0 0.0
    %v78 = vand.u32 %v62, 4294901760
    %79 = vmatpush1.msra.mxu0 %v78
    %80 = vmatprep.subr.mxu0 0.0
    %81 = vmatpush1.msra.mxu0 0.0
    %82 = vmatprep.subr.mxu0 0.0
    %83 = vmatpush1.msra.mxu0 0.0
    %84 = vmatprep.subr.mxu0 0.0
    %85 = vmatpush1.msra.mxu0 0.0
    %86 = vmatprep.subr.mxu0 0.0
    %87 = vmatpush1.msra.mxu0 0.0
    %88 = vmatprep.subr.mxu0 0.0
    %89 = vmatpush1.msra.mxu0 0.0
    %90 = vmatprep.subr.mxu0 0.0
    %91 = vmatpush1.msra.mxu0 0.0
    %92 = vmatprep.subr.mxu0 0.0
    %93 = vmatpush1.msra.mxu0 0.0
    %94 = vmatprep.subr.mxu0 0.0
    %95 = vmatpush1.msra.mxu0 0.0
    %96 = vmatprep.subr.mxu0 0.0
    %97 = vmatpush1.msra.mxu0 0.0
    %98 = vmatprep.subr.mxu0 0.0
    %99 = vmatpush1.msra.mxu0 0.0
    %100 = vmatprep.subr.mxu0 0.0
    %101 = vmatpush1.msra.mxu0 0.0
    %102 = vmatprep.subr.mxu0 0.0
    %103 = vmatpush1.msra.mxu0 0.0
    %104 = vmatprep.subr.mxu0 0.0
    %105 = vmatpush1.msra.mxu0 0.0
    %106 = vmatprep.subr.mxu0 0.0
    %107 = vmatpush1.msra.mxu0 0.0
    %108 = vmatprep.subr.mxu0 0.0
    %109 = vmatpush1.msra.mxu0 0.0
    %110 = vmatprep.subr.mxu0 0.0
    %111 = vmatpush1.msra.mxu0 0.0
    %112 = vmatprep.subr.mxu0 0.0
    %113 = vmatpush1.msra.mxu0 0.0
    %114 = vmatprep.subr.mxu0 0.0
    %115 = vmatpush1.msra.mxu0 0.0
    %116 = vmatprep.subr.mxu0 0.0
    %117 = vmatpush1.msra.mxu0 0.0
    %118 = vmatprep.subr.mxu0 0.0
    %119 = vmatpush1.msra.mxu0 0.0
    %120 = vmatprep.subr.mxu0 0.0
    %121 = vmatpush1.msra.mxu0 0.0
    %122 = vmatprep.subr.mxu0 0.0
    %123 = vmatpush1.msra.mxu0 0.0
    %124 = vmatprep.subr.mxu0 0.0
    %125 = vmatpush1.msra.mxu0 0.0
    %126 = vmatprep.subr.mxu0 0.0
    %127 = vmatpush1.msra.mxu0 0.0
    %128 = vmatprep.subr.mxu0 0.0
    %129 = vmatpush1.msra.mxu0 0.0
    %130 = vmatprep.subr.mxu0 0.0
    %131 = vmatpush1.msra.mxu0 0.0
    %132 = vmatprep.subr.mxu0 0.0
    %133 = vmatpush1.msra.mxu0 0.0
    %134 = vmatprep.subr.mxu0 0.0
    %135 = vmatpush1.msra.mxu0 0.0
    %136 = vmatprep.subr.mxu0 0.0
    %137 = vmatpush1.msra.mxu0 0.0
    %138 = vmatprep.subr.mxu0 0.0
    %139 = vmatpush1.msra.mxu0 0.0
    %140 = vmatprep.mubr.f32.mxu0 0.0
    %v141 = vand.u32 %v72, 4294901760
    %v142 = vsub.f32 %v72, %v141
    %v143 = vand.u32 %v142, 4294901760
    %v144 = vsub.f32 %v142, %v143
    %v145 = vand.u32 %v144, 4294901760
    %146 = vmatmul.mubr.f32.gmra.mrb[0].mxu0 %v145
    %v147 = vpop.f32.mrb[0].mxu0
    %v148 = vadd.f32 %v68, %v147
    %v149 = vpop.f32.mrb[0].mxu0
    %150 = vdwg.mxu0
    %151 = vmatprep.subr.mxu0 0.0
    %v152 = vand.u32 %v61, 4294901760
    %v153 = vsub.f32 %v61, %v152
    %v154 = vand.u32 %v153, 4294901760
    %v155 = vsub.f32 %v153, %v154
    %v156 = vand.u32 %v155, 4294901760
    %157 = vmatpush1.msra.mxu0 %v156
    %158 = vmatprep.subr.mxu0 0.0
    %v159 = vand.u32 %v62, 4294901760
    %v160 = vsub.f32 %v62, %v159
    %v161 = vand.u32 %v160, 4294901760
    %v162 = vsub.f32 %v160, %v161
    %v163 = vand.u32 %v162, 4294901760
    %164 = vmatpush1.msra.mxu0 %v163
    %165 = vmatprep.subr.mxu0 0.0
    %166 = vmatpush1.msra.mxu0 0.0
    %167 = vmatprep.subr.mxu0 0.0
    %168 = vmatpush1.msra.mxu0 0.0
    %169 = vmatprep.subr.mxu0 0.0
    %170 = vmatpush1.msra.mxu0 0.0
    %171 = vmatprep.subr.mxu0 0.0
    %172 = vmatpush1.msra.mxu0 0.0
    %173 = vmatprep.subr.mxu0 0.0
    %174 = vmatpush1.msra.mxu0 0.0
    %175 = vmatprep.subr.mxu0 0.0
    %176 = vmatpush1.msra.mxu0 0.0
    %177 = vmatprep.subr.mxu0 0.0
    %178 = vmatpush1.msra.mxu0 0.0
    %179 = vmatprep.subr.mxu0 0.0
    %180 = vmatpush1.msra.mxu0 0.0
    %181 = vmatprep.subr.mxu0 0.0
    %182 = vmatpush1.msra.mxu0 0.0
    %183 = vmatprep.subr.mxu0 0.0
    %184 = vmatpush1.msra.mxu0 0.0
    %185 = vmatprep.subr.mxu0 0.0
    %186 = vmatpush1.msra.mxu0 0.0
    %187 = vmatprep.subr.mxu0 0.0
    %188 = vmatpush1.msra.mxu0 0.0
    %189 = vmatprep.subr.mxu0 0.0
    %190 = vmatpush1.msra.mxu0 0.0
    %191 = vmatprep.subr.mxu0 0.0
    %192 = vmatpush1.msra.mxu0 0.0
    %193 = vmatprep.subr.mxu0 0.0
    %194 = vmatpush1.msra.mxu0 0.0
    %195 = vmatprep.subr.mxu0 0.0
    %196 = vmatpush1.msra.mxu0 0.0
    %197 = vmatprep.subr.mxu0 0.0
    %198 = vmatpush1.msra.mxu0 0.0
    %199 = vmatprep.subr.mxu0 0.0
    %200 = vmatpush1.msra.mxu0 0.0
    %201 = vmatprep.subr.mxu0 0.0
    %202 = vmatpush1.msra.mxu0 0.0
    %203 = vmatprep.subr.mxu0 0.0
    %204 = vmatpush1.msra.mxu0 0.0
    %205 = vmatprep.subr.mxu0 0.0
    %206 = vmatpush1.msra.mxu0 0.0
    %207 = vmatprep.subr.mxu0 0.0
    %208 = vmatpush1.msra.mxu0 0.0
    %209 = vmatprep.subr.mxu0 0.0
    %210 = vmatpush1.msra.mxu0 0.0
    %211 = vmatprep.subr.mxu0 0.0
    %212 = vmatpush1.msra.mxu0 0.0
    %213 = vmatprep.subr.mxu0 0.0
    %214 = vmatpush1.msra.mxu0 0.0
    %215 = vmatprep.subr.mxu0 0.0
    %216 = vmatpush1.msra.mxu0 0.0
    %217 = vmatprep.subr.mxu0 0.0
    %218 = vmatpush1.msra.mxu0 0.0
    %219 = vmatprep.subr.mxu0 0.0
    %220 = vmatpush1.msra.mxu0 0.0
    %221 = vmatprep.subr.mxu0 0.0
    %222 = vmatpush1.msra.mxu0 0.0
    %223 = vmatprep.subr.mxu0 0.0
    %224 = vmatpush1.msra.mxu0 0.0
    %225 = vmatprep.mubr.f32.mxu0 0.0
    %v226 = vand.u32 %v72, 4294901760
    %227 = vmatmul.mubr.f32.gmra.mrb[0].mxu0 %v226
    %v228 = vpop.f32.mrb[0].mxu0
    %v229 = vadd.f32 %v148, %v228
    %v230 = vpop.f32.mrb[0].mxu0
    %231 = vdwg.mxu0
    %232 = vmatprep.subr.mxu0 0.0
    %v233 = vand.u32 %v61, 4294901760
    %v234 = vsub.f32 %v61, %v233
    %235 = vmatpush1.msra.mxu0 %v234
    %236 = vmatprep.subr.mxu0 0.0
    %v237 = vand.u32 %v62, 4294901760
    %v238 = vsub.f32 %v62, %v237
    %239 = vmatpush1.msra.mxu0 %v238
    %240 = vmatprep.subr.mxu0 0.0
    %241 = vmatpush1.msra.mxu0 0.0
    %242 = vmatprep.subr.mxu0 0.0
    %243 = vmatpush1.msra.mxu0 0.0
    %244 = vmatprep.subr.mxu0 0.0
    %245 = vmatpush1.msra.mxu0 0.0
    %246 = vmatprep.subr.mxu0 0.0
    %247 = vmatpush1.msra.mxu0 0.0
    %248 = vmatprep.subr.mxu0 0.0
    %249 = vmatpush1.msra.mxu0 0.0
    %250 = vmatprep.subr.mxu0 0.0
    %251 = vmatpush1.msra.mxu0 0.0
    %252 = vmatprep.subr.mxu0 0.0
    %253 = vmatpush1.msra.mxu0 0.0
    %254 = vmatprep.subr.mxu0 0.0
    %255 = vmatpush1.msra.mxu0 0.0
    %256 = vmatprep.subr.mxu0 0.0
    %257 = vmatpush1.msra.mxu0 0.0
    %258 = vmatprep.subr.mxu0 0.0
    %259 = vmatpush1.msra.mxu0 0.0
    %260 = vmatprep.subr.mxu0 0.0
    %261 = vmatpush1.msra.mxu0 0.0
    %262 = vmatprep.subr.mxu0 0.0
    %263 = vmatpush1.msra.mxu0 0.0
    %264 = vmatprep.subr.mxu0 0.0
    %265 = vmatpush1.msra.mxu0 0.0
    %266 = vmatprep.subr.mxu0 0.0
    %267 = vmatpush1.msra.mxu0 0.0
    %268 = vmatprep.subr.mxu0 0.0
    %269 = vmatpush1.msra.mxu0 0.0
    %270 = vmatprep.subr.mxu0 0.0
    %271 = vmatpush1.msra.mxu0 0.0
    %272 = vmatprep.subr.mxu0 0.0
    %273 = vmatpush1.msra.mxu0 0.0
    %274 = vmatprep.subr.mxu0 0.0
    %275 = vmatpush1.msra.mxu0 0.0
    %276 = vmatprep.subr.mxu0 0.0
    %277 = vmatpush1.msra.mxu0 0.0
    %278 = vmatprep.subr.mxu0 0.0
    %279 = vmatpush1.msra.mxu0 0.0
    %280 = vmatprep.subr.mxu0 0.0
    %281 = vmatpush1.msra.mxu0 0.0
    %282 = vmatprep.subr.mxu0 0.0
    %283 = vmatpush1.msra.mxu0 0.0
    %284 = vmatprep.subr.mxu0 0.0
    %285 = vmatpush1.msra.mxu0 0.0
    %286 = vmatprep.subr.mxu0 0.0
    %287 = vmatpush1.msra.mxu0 0.0
    %288 = vmatprep.subr.mxu0 0.0
    %289 = vmatpush1.msra.mxu0 0.0
    %290 = vmatprep.subr.mxu0 0.0
    %291 = vmatpush1.msra.mxu0 0.0
    %292 = vmatprep.subr.mxu0 0.0
    %293 = vmatpush1.msra.mxu0 0.0
    %294 = vmatprep.subr.mxu0 0.0
    %295 = vmatpush1.msra.mxu0 0.0
    %296 = vmatprep.subr.mxu0 0.0
    %297 = vmatpush1.msra.mxu0 0.0
    %298 = vmatprep.subr.mxu0 0.0
    %299 = vmatpush1.msra.mxu0 0.0
    %300 = vmatprep.mubr.f32.mxu0 0.0
    %v301 = vand.u32 %v72, 4294901760
    %v302 = vsub.f32 %v72, %v301
    %303 = vmatmul.mubr.f32.gmra.mrb[0].mxu0 %v302
    %v304 = vpop.f32.mrb[0].mxu0
    %v305 = vadd.f32 %v229, %v304
    %v306 = vpop.f32.mrb[0].mxu0
    %307 = vdwg.mxu0
    %308 = vmatprep.subr.mxu0 0.0
    %v309 = vand.u32 %v61, 4294901760
    %310 = vmatpush1.msra.mxu0 %v309
    %311 = vmatprep.subr.mxu0 0.0
    %v312 = vand.u32 %v62, 4294901760
    %313 = vmatpush1.msra.mxu0 %v312
    %314 = vmatprep.subr.mxu0 0.0
    %315 = vmatpush1.msra.mxu0 0.0
    %316 = vmatprep.subr.mxu0 0.0
    %317 = vmatpush1.msra.mxu0 0.0
    %318 = vmatprep.subr.mxu0 0.0
    %319 = vmatpush1.msra.mxu0 0.0
    %320 = vmatprep.subr.mxu0 0.0
    %321 = vmatpush1.msra.mxu0 0.0
    %322 = vmatprep.subr.mxu0 0.0
    %323 = vmatpush1.msra.mxu0 0.0
    %324 = vmatprep.subr.mxu0 0.0
    %325 = vmatpush1.msra.mxu0 0.0
    %326 = vmatprep.subr.mxu0 0.0
    %327 = vmatpush1.msra.mxu0 0.0
    %328 = vmatprep.subr.mxu0 0.0
    %329 = vmatpush1.msra.mxu0 0.0
    %330 = vmatprep.subr.mxu0 0.0
    %331 = vmatpush1.msra.mxu0 0.0
    %332 = vmatprep.subr.mxu0 0.0
    %333 = vmatpush1.msra.mxu0 0.0
    %334 = vmatprep.subr.mxu0 0.0
    %335 = vmatpush1.msra.mxu0 0.0
    %336 = vmatprep.subr.mxu0 0.0
    %337 = vmatpush1.msra.mxu0 0.0
    %338 = vmatprep.subr.mxu0 0.0
    %339 = vmatpush1.msra.mxu0 0.0
    %340 = vmatprep.subr.mxu0 0.0
    %341 = vmatpush1.msra.mxu0 0.0
    %342 = vmatprep.subr.mxu0 0.0
    %343 = vmatpush1.msra.mxu0 0.0
    %344 = vmatprep.subr.mxu0 0.0
    %345 = vmatpush1.msra.mxu0 0.0
    %346 = vmatprep.subr.mxu0 0.0
    %347 = vmatpush1.msra.mxu0 0.0
    %348 = vmatprep.subr.mxu0 0.0
    %349 = vmatpush1.msra.mxu0 0.0
    %350 = vmatprep.subr.mxu0 0.0
    %351 = vmatpush1.msra.mxu0 0.0
    %352 = vmatprep.subr.mxu0 0.0
    %353 = vmatpush1.msra.mxu0 0.0
    %354 = vmatprep.subr.mxu0 0.0
    %355 = vmatpush1.msra.mxu0 0.0
    %356 = vmatprep.subr.mxu0 0.0
    %357 = vmatpush1.msra.mxu0 0.0
    %358 = vmatprep.subr.mxu0 0.0
    %359 = vmatpush1.msra.mxu0 0.0
    %360 = vmatprep.subr.mxu0 0.0
    %361 = vmatpush1.msra.mxu0 0.0
    %362 = vmatprep.subr.mxu0 0.0
    %363 = vmatpush1.msra.mxu0 0.0
    %364 = vmatprep.subr.mxu0 0.0
    %365 = vmatpush1.msra.mxu0 0.0
    %366 = vmatprep.subr.mxu0 0.0
    %367 = vmatpush1.msra.mxu0 0.0
    %368 = vmatprep.subr.mxu0 0.0
    %369 = vmatpush1.msra.mxu0 0.0
    %370 = vmatprep.subr.mxu0 0.0
    %371 = vmatpush1.msra.mxu0 0.0
    %372 = vmatprep.subr.mxu0 0.0
    %373 = vmatpush1.msra.mxu0 0.0
    %374 = vmatprep.mubr.f32.mxu0 0.0
    %v375 = vand.u32 %v72, 4294901760
    %v376 = vsub.f32 %v72, %v375
    %v377 = vand.u32 %v376, 4294901760
    %378 = vmatmul.mubr.f32.gmra.mrb[0].mxu0 %v377
    %v379 = vpop.f32.mrb[0].mxu0
    %v380 = vadd.f32 %v305, %v379
    %v381 = vpop.f32.mrb[0].mxu0
    %382 = vdwg.mxu0
    %383 = vmatprep.subr.mxu0 0.0
    %v384 = vand.u32 %v61, 4294901760
    %v385 = vsub.f32 %v61, %v384
    %v386 = vand.u32 %v385, 4294901760
    %387 = vmatpush1.msra.mxu0 %v386
    %388 = vmatprep.subr.mxu0 0.0
    %v389 = vand.u32 %v62, 4294901760
    %v390 = vsub.f32 %v62, %v389
    %v391 = vand.u32 %v390, 4294901760
    %392 = vmatpush1.msra.mxu0 %v391
    %393 = vmatprep.subr.mxu0 0.0
    %394 = vmatpush1.msra.mxu0 0.0
    %395 = vmatprep.subr.mxu0 0.0
    %396 = vmatpush1.msra.mxu0 0.0
    %397 = vmatprep.subr.mxu0 0.0
    %398 = vmatpush1.msra.mxu0 0.0
    %399 = vmatprep.subr.mxu0 0.0
    %400 = vmatpush1.msra.mxu0 0.0
    %401 = vmatprep.subr.mxu0 0.0
    %402 = vmatpush1.msra.mxu0 0.0
    %403 = vmatprep.subr.mxu0 0.0
    %404 = vmatpush1.msra.mxu0 0.0
    %405 = vmatprep.subr.mxu0 0.0
    %406 = vmatpush1.msra.mxu0 0.0
    %407 = vmatprep.subr.mxu0 0.0
    %408 = vmatpush1.msra.mxu0 0.0
    %409 = vmatprep.subr.mxu0 0.0
    %410 = vmatpush1.msra.mxu0 0.0
    %411 = vmatprep.subr.mxu0 0.0
    %412 = vmatpush1.msra.mxu0 0.0
    %413 = vmatprep.subr.mxu0 0.0
    %414 = vmatpush1.msra.mxu0 0.0
    %415 = vmatprep.subr.mxu0 0.0
    %416 = vmatpush1.msra.mxu0 0.0
    %417 = vmatprep.subr.mxu0 0.0
    %418 = vmatpush1.msra.mxu0 0.0
    %419 = vmatprep.subr.mxu0 0.0
    %420 = vmatpush1.msra.mxu0 0.0
    %421 = vmatprep.subr.mxu0 0.0
    %422 = vmatpush1.msra.mxu0 0.0
    %423 = vmatprep.subr.mxu0 0.0
    %424 = vmatpush1.msra.mxu0 0.0
    %425 = vmatprep.subr.mxu0 0.0
    %426 = vmatpush1.msra.mxu0 0.0
    %427 = vmatprep.subr.mxu0 0.0
    %428 = vmatpush1.msra.mxu0 0.0
    %429 = vmatprep.subr.mxu0 0.0
    %430 = vmatpush1.msra.mxu0 0.0
    %431 = vmatprep.subr.mxu0 0.0
    %432 = vmatpush1.msra.mxu0 0.0
    %433 = vmatprep.subr.mxu0 0.0
    %434 = vmatpush1.msra.mxu0 0.0
    %435 = vmatprep.subr.mxu0 0.0
    %436 = vmatpush1.msra.mxu0 0.0
    %437 = vmatprep.subr.mxu0 0.0
    %438 = vmatpush1.msra.mxu0 0.0
    %439 = vmatprep.subr.mxu0 0.0
    %440 = vmatpush1.msra.mxu0 0.0
    %441 = vmatprep.subr.mxu0 0.0
    %442 = vmatpush1.msra.mxu0 0.0
    %443 = vmatprep.subr.mxu0 0.0
    %444 = vmatpush1.msra.mxu0 0.0
    %445 = vmatprep.subr.mxu0 0.0
    %446 = vmatpush1.msra.mxu0 0.0
    %447 = vmatprep.subr.mxu0 0.0
    %448 = vmatpush1.msra.mxu0 0.0
    %449 = vmatprep.subr.mxu0 0.0
    %450 = vmatpush1.msra.mxu0 0.0
    %451 = vmatprep.subr.mxu0 0.0
    %452 = vmatpush1.msra.mxu0 0.0
    %453 = vmatprep.mubr.f32.mxu0 0.0
    %v454 = vand.u32 %v72, 4294901760
    %455 = vmatmul.mubr.f32.gmra.mrb[0].mxu0 %v454
    %v456 = vpop.f32.mrb[0].mxu0
    %v457 = vadd.f32 %v380, %v456
    %v458 = vpop.f32.mrb[0].mxu0
    %459 = vdwg.mxu0
    %460 = vmatprep.subr.mxu0 0.0
    %v461 = vand.u32 %v61, 4294901760
    %462 = vmatpush1.msra.mxu0 %v461
    %463 = vmatprep.subr.mxu0 0.0
    %v464 = vand.u32 %v62, 4294901760
    %465 = vmatpush1.msra.mxu0 %v464
    %466 = vmatprep.subr.mxu0 0.0
    %467 = vmatpush1.msra.mxu0 0.0
    %468 = vmatprep.subr.mxu0 0.0
    %469 = vmatpush1.msra.mxu0 0.0
    %470 = vmatprep.subr.mxu0 0.0
    %471 = vmatpush1.msra.mxu0 0.0
    %472 = vmatprep.subr.mxu0 0.0
    %473 = vmatpush1.msra.mxu0 0.0
    %474 = vmatprep.subr.mxu0 0.0
    %475 = vmatpush1.msra.mxu0 0.0
    %476 = vmatprep.subr.mxu0 0.0
    %477 = vmatpush1.msra.mxu0 0.0
    %478 = vmatprep.subr.mxu0 0.0
    %479 = vmatpush1.msra.mxu0 0.0
    %480 = vmatprep.subr.mxu0 0.0
    %481 = vmatpush1.msra.mxu0 0.0
    %482 = vmatprep.subr.mxu0 0.0
    %483 = vmatpush1.msra.mxu0 0.0
    %484 = vmatprep.subr.mxu0 0.0
    %485 = vmatpush1.msra.mxu0 0.0
    %486 = vmatprep.subr.mxu0 0.0
    %487 = vmatpush1.msra.mxu0 0.0
    %488 = vmatprep.subr.mxu0 0.0
    %489 = vmatpush1.msra.mxu0 0.0
    %490 = vmatprep.subr.mxu0 0.0
    %491 = vmatpush1.msra.mxu0 0.0
    %492 = vmatprep.subr.mxu0 0.0
    %493 = vmatpush1.msra.mxu0 0.0
    %494 = vmatprep.subr.mxu0 0.0
    %495 = vmatpush1.msra.mxu0 0.0
    %496 = vmatprep.subr.mxu0 0.0
    %497 = vmatpush1.msra.mxu0 0.0
    %498 = vmatprep.subr.mxu0 0.0
    %499 = vmatpush1.msra.mxu0 0.0
    %500 = vmatprep.subr.mxu0 0.0
    %501 = vmatpush1.msra.mxu0 0.0
    %502 = vmatprep.subr.mxu0 0.0
    %503 = vmatpush1.msra.mxu0 0.0
    %504 = vmatprep.subr.mxu0 0.0
    %505 = vmatpush1.msra.mxu0 0.0
    %506 = vmatprep.subr.mxu0 0.0
    %507 = vmatpush1.msra.mxu0 0.0
    %508 = vmatprep.subr.mxu0 0.0
    %509 = vmatpush1.msra.mxu0 0.0
    %510 = vmatprep.subr.mxu0 0.0
    %511 = vmatpush1.msra.mxu0 0.0
    %512 = vmatprep.subr.mxu0 0.0
    %513 = vmatpush1.msra.mxu0 0.0
    %514 = vmatprep.subr.mxu0 0.0
    %515 = vmatpush1.msra.mxu0 0.0
    %516 = vmatprep.subr.mxu0 0.0
    %517 = vmatpush1.msra.mxu0 0.0
    %518 = vmatprep.subr.mxu0 0.0
    %519 = vmatpush1.msra.mxu0 0.0
    %520 = vmatprep.subr.mxu0 0.0
    %521 = vmatpush1.msra.mxu0 0.0
    %522 = vmatprep.subr.mxu0 0.0
    %523 = vmatpush1.msra.mxu0 0.0
    %524 = vmatprep.subr.mxu0 0.0
    %525 = vmatpush1.msra.mxu0 0.0
    %526 = vmatprep.mubr.f32.mxu0 0.0
    %v527 = vand.u32 %v72, 4294901760
    %528 = vmatmul.mubr.f32.gmra.mrb[0].mxu0 %v527
    %v529 = vpop.f32.mrb[0].mxu0
    %v530 = vadd.f32 %v457, %v529
    %v531 = vpop.f32.mrb[0].mxu0
    %532 = vdwg.mxu0
    %vm533 = vcmp.gt.f32.partialorder %v530, 0.0
    %v534 = vmul.f32 %v530, 0.01
    %v535 = vsel %vm533, %v530, %v534
    %v536 = vld [vmem:[#allocation7] sm:$0xff]
    %v537 = vld [vmem:[#allocation7 + $0x8] sm:$0xff]
    %v538 = vld [vmem:[#allocation7 + $0x10] sm:$0xff]
    %v539 = vld [vmem:[#allocation7 + $0x18] sm:$0xff]
    %v540 = vld [vmem:[%s4] sm:$0x1]
    %v542 = vlaneseq
    %v543 = vshrl.u32 %v542, 7
    %v544 = vsub.s32 0, %v543
    %v545 = vrot.slane %v540, %v544
    %vm547 = vcmask 261120
    %v549 = vsel %vm547, %v535, 0
    %551 = vmatprep.subr.mxu0 0.0
    %v552 = vand.u32 %v536, 4294901760
    %553 = vmatpush1.msra.mxu0 %v552
    %554 = vmatprep.subr.mxu0 0.0
    %v555 = vand.u32 %v537, 4294901760
    %556 = vmatpush1.msra.mxu0 %v555
    %557 = vmatprep.subr.mxu0 0.0
    %v558 = vand.u32 %v538, 4294901760
    %559 = vmatpush1.msra.mxu0 %v558
    %560 = vmatprep.subr.mxu0 0.0
    %v561 = vand.u32 %v539, 4294901760
    %562 = vmatpush1.msra.mxu0 %v561
    %563 = vmatprep.subr.mxu0 0.0
    %564 = vmatpush1.msra.mxu0 0.0
    %565 = vmatprep.subr.mxu0 0.0
    %566 = vmatpush1.msra.mxu0 0.0
    %567 = vmatprep.subr.mxu0 0.0
    %568 = vmatpush1.msra.mxu0 0.0
    %569 = vmatprep.subr.mxu0 0.0
    %570 = vmatpush1.msra.mxu0 0.0
    %571 = vmatprep.subr.mxu0 0.0
    %572 = vmatpush1.msra.mxu0 0.0
    %573 = vmatprep.subr.mxu0 0.0
    %574 = vmatpush1.msra.mxu0 0.0
    %575 = vmatprep.subr.mxu0 0.0
    %576 = vmatpush1.msra.mxu0 0.0
    %577 = vmatprep.subr.mxu0 0.0
    %578 = vmatpush1.msra.mxu0 0.0
    %579 = vmatprep.subr.mxu0 0.0
    %580 = vmatpush1.msra.mxu0 0.0
    %581 = vmatprep.subr.mxu0 0.0
    %582 = vmatpush1.msra.mxu0 0.0
    %583 = vmatprep.subr.mxu0 0.0
    %584 = vmatpush1.msra.mxu0 0.0
    %585 = vmatprep.subr.mxu0 0.0
    %586 = vmatpush1.msra.mxu0 0.0
    %587 = vmatprep.subr.mxu0 0.0
    %588 = vmatpush1.msra.mxu0 0.0
    %589 = vmatprep.subr.mxu0 0.0
    %590 = vmatpush1.msra.mxu0 0.0
    %591 = vmatprep.subr.mxu0 0.0
    %592 = vmatpush1.msra.mxu0 0.0
    %593 = vmatprep.subr.mxu0 0.0
    %594 = vmatpush1.msra.mxu0 0.0
    %595 = vmatprep.subr.mxu0 0.0
    %596 = vmatpush1.msra.mxu0 0.0
    %597 = vmatprep.subr.mxu0 0.0
    %598 = vmatpush1.msra.mxu0 0.0
    %599 = vmatprep.subr.mxu0 0.0
    %600 = vmatpush1.msra.mxu0 0.0
    %601 = vmatprep.subr.mxu0 0.0
    %602 = vmatpush1.msra.mxu0 0.0
    %603 = vmatprep.subr.mxu0 0.0
    %604 = vmatpush1.msra.mxu0 0.0
    %605 = vmatprep.subr.mxu0 0.0
    %606 = vmatpush1.msra.mxu0 0.0
    %607 = vmatprep.subr.mxu0 0.0
    %608 = vmatpush1.msra.mxu0 0.0
    %609 = vmatprep.subr.mxu0 0.0
    %610 = vmatpush1.msra.mxu0 0.0
    %611 = vmatprep.subr.mxu0 0.0
    %612 = vmatpush1.msra.mxu0 0.0
    %613 = vmatprep.subr.mxu0 0.0
    %614 = vmatpush1.msra.mxu0 0.0
    %615 = vmatprep.subr.mxu0 0.0
    %616 = vmatpush1.msra.mxu0 0.0
    %617 = vmatprep.subr.mxu0 0.0
    %618 = vmatpush1.msra.mxu0 0.0
    %619 = vmatprep.mubr.f32.mxu0 0.0
    %v620 = vand.u32 %v549, 4294901760
    %v621 = vsub.f32 %v549, %v620
    %v622 = vand.u32 %v621, 4294901760
    %v623 = vsub.f32 %v621, %v622
    %v624 = vand.u32 %v623, 4294901760
    %625 = vmatmul.mubr.f32.gmra.mrb[0].mxu0 %v624
    %v626 = vpop.f32.mrb[0].mxu0
    %v627 = vadd.f32 %v545, %v626
    %v628 = vpop.f32.mrb[0].mxu0
    %629 = vdwg.mxu0
    %630 = vmatprep.subr.mxu0 0.0
    %v631 = vand.u32 %v536, 4294901760
    %v632 = vsub.f32 %v536, %v631
    %v633 = vand.u32 %v632, 4294901760
    %v634 = vsub.f32 %v632, %v633
    %v635 = vand.u32 %v634, 4294901760
    %636 = vmatpush1.msra.mxu0 %v635
    %637 = vmatprep.subr.mxu0 0.0
    %v638 = vand.u32 %v537, 4294901760
    %v639 = vsub.f32 %v537, %v638
    %v640 = vand.u32 %v639, 4294901760
    %v641 = vsub.f32 %v639, %v640
    %v642 = vand.u32 %v641, 4294901760
    %643 = vmatpush1.msra.mxu0 %v642
    %644 = vmatprep.subr.mxu0 0.0
    %v645 = vand.u32 %v538, 4294901760
    %v646 = vsub.f32 %v538, %v645
    %v647 = vand.u32 %v646, 4294901760
    %v648 = vsub.f32 %v646, %v647
    %v649 = vand.u32 %v648, 4294901760
    %650 = vmatpush1.msra.mxu0 %v649
    %651 = vmatprep.subr.mxu0 0.0
    %v652 = vand.u32 %v539, 4294901760
    %v653 = vsub.f32 %v539, %v652
    %v654 = vand.u32 %v653, 4294901760
    %v655 = vsub.f32 %v653, %v654
    %v656 = vand.u32 %v655, 4294901760
    %657 = vmatpush1.msra.mxu0 %v656
    %658 = vmatprep.subr.mxu0 0.0
    %659 = vmatpush1.msra.mxu0 0.0
    %660 = vmatprep.subr.mxu0 0.0
    %661 = vmatpush1.msra.mxu0 0.0
    %662 = vmatprep.subr.mxu0 0.0
    %663 = vmatpush1.msra.mxu0 0.0
    %664 = vmatprep.subr.mxu0 0.0
    %665 = vmatpush1.msra.mxu0 0.0
    %666 = vmatprep.subr.mxu0 0.0
    %667 = vmatpush1.msra.mxu0 0.0
    %668 = vmatprep.subr.mxu0 0.0
    %669 = vmatpush1.msra.mxu0 0.0
    %670 = vmatprep.subr.mxu0 0.0
    %671 = vmatpush1.msra.mxu0 0.0
    %672 = vmatprep.subr.mxu0 0.0
    %673 = vmatpush1.msra.mxu0 0.0
    %674 = vmatprep.subr.mxu0 0.0
    %675 = vmatpush1.msra.mxu0 0.0
    %676 = vmatprep.subr.mxu0 0.0
    %677 = vmatpush1.msra.mxu0 0.0
    %678 = vmatprep.subr.mxu0 0.0
    %679 = vmatpush1.msra.mxu0 0.0
    %680 = vmatprep.subr.mxu0 0.0
    %681 = vmatpush1.msra.mxu0 0.0
    %682 = vmatprep.subr.mxu0 0.0
    %683 = vmatpush1.msra.mxu0 0.0
    %684 = vmatprep.subr.mxu0 0.0
    %685 = vmatpush1.msra.mxu0 0.0
    %686 = vmatprep.subr.mxu0 0.0
    %687 = vmatpush1.msra.mxu0 0.0
    %688 = vmatprep.subr.mxu0 0.0
    %689 = vmatpush1.msra.mxu0 0.0
    %690 = vmatprep.subr.mxu0 0.0
    %691 = vmatpush1.msra.mxu0 0.0
    %692 = vmatprep.subr.mxu0 0.0
    %693 = vmatpush1.msra.mxu0 0.0
    %694 = vmatprep.subr.mxu0 0.0
    %695 = vmatpush1.msra.mxu0 0.0
    %696 = vmatprep.subr.mxu0 0.0
    %697 = vmatpush1.msra.mxu0 0.0
    %698 = vmatprep.subr.mxu0 0.0
    %699 = vmatpush1.msra.mxu0 0.0
    %700 = vmatprep.subr.mxu0 0.0
    %701 = vmatpush1.msra.mxu0 0.0
    %702 = vmatprep.subr.mxu0 0.0
    %703 = vmatpush1.msra.mxu0 0.0
    %704 = vmatprep.subr.mxu0 0.0
    %705 = vmatpush1.msra.mxu0 0.0
    %706 = vmatprep.subr.mxu0 0.0
    %707 = vmatpush1.msra.mxu0 0.0
    %708 = vmatprep.subr.mxu0 0.0
    %709 = vmatpush1.msra.mxu0 0.0
    %710 = vmatprep.subr.mxu0 0.0
    %711 = vmatpush1.msra.mxu0 0.0
    %712 = vmatprep.subr.mxu0 0.0
    %713 = vmatpush1.msra.mxu0 0.0
    %714 = vmatprep.mubr.f32.mxu0 0.0
    %v715 = vand.u32 %v549, 4294901760
    %716 = vmatmul.mubr.f32.gmra.mrb[0].mxu0 %v715
    %v717 = vpop.f32.mrb[0].mxu0
    %v718 = vadd.f32 %v627, %v717
    %v719 = vpop.f32.mrb[0].mxu0
    %720 = vdwg.mxu0
    %721 = vmatprep.subr.mxu0 0.0
    %v722 = vand.u32 %v536, 4294901760
    %v723 = vsub.f32 %v536, %v722
    %724 = vmatpush1.msra.mxu0 %v723
    %725 = vmatprep.subr.mxu0 0.0
    %v726 = vand.u32 %v537, 4294901760
    %v727 = vsub.f32 %v537, %v726
    %728 = vmatpush1.msra.mxu0 %v727
    %729 = vmatprep.subr.mxu0 0.0
    %v730 = vand.u32 %v538, 4294901760
    %v731 = vsub.f32 %v538, %v730
    %732 = vmatpush1.msra.mxu0 %v731
    %733 = vmatprep.subr.mxu0 0.0
    %v734 = vand.u32 %v539, 4294901760
    %v735 = vsub.f32 %v539, %v734
    %736 = vmatpush1.msra.mxu0 %v735
    %737 = vmatprep.subr.mxu0 0.0
    %738 = vmatpush1.msra.mxu0 0.0
    %739 = vmatprep.subr.mxu0 0.0
    %740 = vmatpush1.msra.mxu0 0.0
    %741 = vmatprep.subr.mxu0 0.0
    %742 = vmatpush1.msra.mxu0 0.0
    %743 = vmatprep.subr.mxu0 0.0
    %744 = vmatpush1.msra.mxu0 0.0
    %745 = vmatprep.subr.mxu0 0.0
    %746 = vmatpush1.msra.mxu0 0.0
    %747 = vmatprep.subr.mxu0 0.0
    %748 = vmatpush1.msra.mxu0 0.0
    %749 = vmatprep.subr.mxu0 0.0
    %750 = vmatpush1.msra.mxu0 0.0
    %751 = vmatprep.subr.mxu0 0.0
    %752 = vmatpush1.msra.mxu0 0.0
    %753 = vmatprep.subr.mxu0 0.0
    %754 = vmatpush1.msra.mxu0 0.0
    %755 = vmatprep.subr.mxu0 0.0
    %756 = vmatpush1.msra.mxu0 0.0
    %757 = vmatprep.subr.mxu0 0.0
    %758 = vmatpush1.msra.mxu0 0.0
    %759 = vmatprep.subr.mxu0 0.0
    %760 = vmatpush1.msra.mxu0 0.0
    %761 = vmatprep.subr.mxu0 0.0
    %762 = vmatpush1.msra.mxu0 0.0
    %763 = vmatprep.subr.mxu0 0.0
    %764 = vmatpush1.msra.mxu0 0.0
    %765 = vmatprep.subr.mxu0 0.0
    %766 = vmatpush1.msra.mxu0 0.0
    %767 = vmatprep.subr.mxu0 0.0
    %768 = vmatpush1.msra.mxu0 0.0
    %769 = vmatprep.subr.mxu0 0.0
    %770 = vmatpush1.msra.mxu0 0.0
    %771 = vmatprep.subr.mxu0 0.0
    %772 = vmatpush1.msra.mxu0 0.0
    %773 = vmatprep.subr.mxu0 0.0
    %774 = vmatpush1.msra.mxu0 0.0
    %775 = vmatprep.subr.mxu0 0.0
    %776 = vmatpush1.msra.mxu0 0.0
    %777 = vmatprep.subr.mxu0 0.0
    %778 = vmatpush1.msra.mxu0 0.0
    %779 = vmatprep.subr.mxu0 0.0
    %780 = vmatpush1.msra.mxu0 0.0
    %781 = vmatprep.subr.mxu0 0.0
    %782 = vmatpush1.msra.mxu0 0.0
    %783 = vmatprep.subr.mxu0 0.0
    %784 = vmatpush1.msra.mxu0 0.0
    %785 = vmatprep.subr.mxu0 0.0
    %786 = vmatpush1.msra.mxu0 0.0
    %787 = vmatprep.subr.mxu0 0.0
    %788 = vmatpush1.msra.mxu0 0.0
    %789 = vmatprep.subr.mxu0 0.0
    %790 = vmatpush1.msra.mxu0 0.0
    %791 = vmatprep.subr.mxu0 0.0
    %792 = vmatpush1.msra.mxu0 0.0
    %793 = vmatprep.mubr.f32.mxu0 0.0
    %v794 = vand.u32 %v549, 4294901760
    %v795 = vsub.f32 %v549, %v794
    %796 = vmatmul.mubr.f32.gmra.mrb[0].mxu0 %v795
    %v797 = vpop.f32.mrb[0].mxu0
    %v798 = vadd.f32 %v718, %v797
    %v799 = vpop.f32.mrb[0].mxu0
    %800 = vdwg.mxu0
    %801 = vmatprep.subr.mxu0 0.0
    %v802 = vand.u32 %v536, 4294901760
    %803 = vmatpush1.msra.mxu0 %v802
    %804 = vmatprep.subr.mxu0 0.0
    %v805 = vand.u32 %v537, 4294901760
    %806 = vmatpush1.msra.mxu0 %v805
    %807 = vmatprep.subr.mxu0 0.0
    %v808 = vand.u32 %v538, 4294901760
    %809 = vmatpush1.msra.mxu0 %v808
    %810 = vmatprep.subr.mxu0 0.0
    %v811 = vand.u32 %v539, 4294901760
    %812 = vmatpush1.msra.mxu0 %v811
    %813 = vmatprep.subr.mxu0 0.0
    %814 = vmatpush1.msra.mxu0 0.0
    %815 = vmatprep.subr.mxu0 0.0
    %816 = vmatpush1.msra.mxu0 0.0
    %817 = vmatprep.subr.mxu0 0.0
    %818 = vmatpush1.msra.mxu0 0.0
    %819 = vmatprep.subr.mxu0 0.0
    %820 = vmatpush1.msra.mxu0 0.0
    %821 = vmatprep.subr.mxu0 0.0
    %822 = vmatpush1.msra.mxu0 0.0
    %823 = vmatprep.subr.mxu0 0.0
    %824 = vmatpush1.msra.mxu0 0.0
    %825 = vmatprep.subr.mxu0 0.0
    %826 = vmatpush1.msra.mxu0 0.0
    %827 = vmatprep.subr.mxu0 0.0
    %828 = vmatpush1.msra.mxu0 0.0
    %829 = vmatprep.subr.mxu0 0.0
    %830 = vmatpush1.msra.mxu0 0.0
    %831 = vmatprep.subr.mxu0 0.0
    %832 = vmatpush1.msra.mxu0 0.0
    %833 = vmatprep.subr.mxu0 0.0
    %834 = vmatpush1.msra.mxu0 0.0
    %835 = vmatprep.subr.mxu0 0.0
    %836 = vmatpush1.msra.mxu0 0.0
    %837 = vmatprep.subr.mxu0 0.0
    %838 = vmatpush1.msra.mxu0 0.0
    %839 = vmatprep.subr.mxu0 0.0
    %840 = vmatpush1.msra.mxu0 0.0
    %841 = vmatprep.subr.mxu0 0.0
    %842 = vmatpush1.msra.mxu0 0.0
    %843 = vmatprep.subr.mxu0 0.0
    %844 = vmatpush1.msra.mxu0 0.0
    %845 = vmatprep.subr.mxu0 0.0
    %846 = vmatpush1.msra.mxu0 0.0
    %847 = vmatprep.subr.mxu0 0.0
    %848 = vmatpush1.msra.mxu0 0.0
    %849 = vmatprep.subr.mxu0 0.0
    %850 = vmatpush1.msra.mxu0 0.0
    %851 = vmatprep.subr.mxu0 0.0
    %852 = vmatpush1.msra.mxu0 0.0
    %853 = vmatprep.subr.mxu0 0.0
    %854 = vmatpush1.msra.mxu0 0.0
    %855 = vmatprep.subr.mxu0 0.0
    %856 = vmatpush1.msra.mxu0 0.0
    %857 = vmatprep.subr.mxu0 0.0
    %858 = vmatpush1.msra.mxu0 0.0
    %859 = vmatprep.subr.mxu0 0.0
    %860 = vmatpush1.msra.mxu0 0.0
    %861 = vmatprep.subr.mxu0 0.0
    %862 = vmatpush1.msra.mxu0 0.0
    %863 = vmatprep.subr.mxu0 0.0
    %864 = vmatpush1.msra.mxu0 0.0
    %865 = vmatprep.subr.mxu0 0.0
    %866 = vmatpush1.msra.mxu0 0.0
    %867 = vmatprep.subr.mxu0 0.0
    %868 = vmatpush1.msra.mxu0 0.0
    %869 = vmatprep.mubr.f32.mxu0 0.0
    %v870 = vand.u32 %v549, 4294901760
    %v871 = vsub.f32 %v549, %v870
    %v872 = vand.u32 %v871, 4294901760
    %873 = vmatmul.mubr.f32.gmra.mrb[0].mxu0 %v872
    %v874 = vpop.f32.mrb[0].mxu0
    %v875 = vadd.f32 %v798, %v874
    %v876 = vpop.f32.mrb[0].mxu0
    %877 = vdwg.mxu0
    %878 = vmatprep.subr.mxu0 0.0
    %v879 = vand.u32 %v536, 4294901760
    %v880 = vsub.f32 %v536, %v879
    %v881 = vand.u32 %v880, 4294901760
    %882 = vmatpush1.msra.mxu0 %v881
    %883 = vmatprep.subr.mxu0 0.0
    %v884 = vand.u32 %v537, 4294901760
    %v885 = vsub.f32 %v537, %v884
    %v886 = vand.u32 %v885, 4294901760
    %887 = vmatpush1.msra.mxu0 %v886
    %888 = vmatprep.subr.mxu0 0.0
    %v889 = vand.u32 %v538, 4294901760
    %v890 = vsub.f32 %v538, %v889
    %v891 = vand.u32 %v890, 4294901760
    %892 = vmatpush1.msra.mxu0 %v891
    %893 = vmatprep.subr.mxu0 0.0
    %v894 = vand.u32 %v539, 4294901760
    %v895 = vsub.f32 %v539, %v894
    %v896 = vand.u32 %v895, 4294901760
    %897 = vmatpush1.msra.mxu0 %v896
    %898 = vmatprep.subr.mxu0 0.0
    %899 = vmatpush1.msra.mxu0 0.0
    %900 = vmatprep.subr.mxu0 0.0
    %901 = vmatpush1.msra.mxu0 0.0
    %902 = vmatprep.subr.mxu0 0.0
    %903 = vmatpush1.msra.mxu0 0.0
    %904 = vmatprep.subr.mxu0 0.0
    %905 = vmatpush1.msra.mxu0 0.0
    %906 = vmatprep.subr.mxu0 0.0
    %907 = vmatpush1.msra.mxu0 0.0
    %908 = vmatprep.subr.mxu0 0.0
    %909 = vmatpush1.msra.mxu0 0.0
    %910 = vmatprep.subr.mxu0 0.0
    %911 = vmatpush1.msra.mxu0 0.0
    %912 = vmatprep.subr.mxu0 0.0
    %913 = vmatpush1.msra.mxu0 0.0
    %914 = vmatprep.subr.mxu0 0.0
    %915 = vmatpush1.msra.mxu0 0.0
    %916 = vmatprep.subr.mxu0 0.0
    %917 = vmatpush1.msra.mxu0 0.0
    %918 = vmatprep.subr.mxu0 0.0
    %919 = vmatpush1.msra.mxu0 0.0
    %920 = vmatprep.subr.mxu0 0.0
    %921 = vmatpush1.msra.mxu0 0.0
    %922 = vmatprep.subr.mxu0 0.0
    %923 = vmatpush1.msra.mxu0 0.0
    %924 = vmatprep.subr.mxu0 0.0
    %925 = vmatpush1.msra.mxu0 0.0
    %926 = vmatprep.subr.mxu0 0.0
    %927 = vmatpush1.msra.mxu0 0.0
    %928 = vmatprep.subr.mxu0 0.0
    %929 = vmatpush1.msra.mxu0 0.0
    %930 = vmatprep.subr.mxu0 0.0
    %931 = vmatpush1.msra.mxu0 0.0
    %932 = vmatprep.subr.mxu0 0.0
    %933 = vmatpush1.msra.mxu0 0.0
    %934 = vmatprep.subr.mxu0 0.0
    %935 = vmatpush1.msra.mxu0 0.0
    %936 = vmatprep.subr.mxu0 0.0
    %937 = vmatpush1.msra.mxu0 0.0
    %938 = vmatprep.subr.mxu0 0.0
    %939 = vmatpush1.msra.mxu0 0.0
    %940 = vmatprep.subr.mxu0 0.0
    %941 = vmatpush1.msra.mxu0 0.0
    %942 = vmatprep.subr.mxu0 0.0
    %943 = vmatpush1.msra.mxu0 0.0
    %944 = vmatprep.subr.mxu0 0.0
    %945 = vmatpush1.msra.mxu0 0.0
    %946 = vmatprep.subr.mxu0 0.0
    %947 = vmatpush1.msra.mxu0 0.0
    %948 = vmatprep.subr.mxu0 0.0
    %949 = vmatpush1.msra.mxu0 0.0
    %950 = vmatprep.subr.mxu0 0.0
    %951 = vmatpush1.msra.mxu0 0.0
    %952 = vmatprep.subr.mxu0 0.0
    %953 = vmatpush1.msra.mxu0 0.0
    %954 = vmatprep.mubr.f32.mxu0 0.0
    %v955 = vand.u32 %v549, 4294901760
    %956 = vmatmul.mubr.f32.gmra.mrb[0].mxu0 %v955
    %v957 = vpop.f32.mrb[0].mxu0
    %v958 = vadd.f32 %v875, %v957
    %v959 = vpop.f32.mrb[0].mxu0
    %960 = vdwg.mxu0
    %961 = vmatprep.subr.mxu0 0.0
    %v962 = vand.u32 %v536, 4294901760
    %963 = vmatpush1.msra.mxu0 %v962
    %964 = vmatprep.subr.mxu0 0.0
    %v965 = vand.u32 %v537, 4294901760
    %966 = vmatpush1.msra.mxu0 %v965
    %967 = vmatprep.subr.mxu0 0.0
    %v968 = vand.u32 %v538, 4294901760
    %969 = vmatpush1.msra.mxu0 %v968
    %970 = vmatprep.subr.mxu0 0.0
    %v971 = vand.u32 %v539, 4294901760
    %972 = vmatpush1.msra.mxu0 %v971
    %973 = vmatprep.subr.mxu0 0.0
    %974 = vmatpush1.msra.mxu0 0.0
    %975 = vmatprep.subr.mxu0 0.0
    %976 = vmatpush1.msra.mxu0 0.0
    %977 = vmatprep.subr.mxu0 0.0
    %978 = vmatpush1.msra.mxu0 0.0
    %979 = vmatprep.subr.mxu0 0.0
    %980 = vmatpush1.msra.mxu0 0.0
    %981 = vmatprep.subr.mxu0 0.0
    %982 = vmatpush1.msra.mxu0 0.0
    %983 = vmatprep.subr.mxu0 0.0
    %984 = vmatpush1.msra.mxu0 0.0
    %985 = vmatprep.subr.mxu0 0.0
    %986 = vmatpush1.msra.mxu0 0.0
    %987 = vmatprep.subr.mxu0 0.0
    %988 = vmatpush1.msra.mxu0 0.0
    %989 = vmatprep.subr.mxu0 0.0
    %990 = vmatpush1.msra.mxu0 0.0
    %991 = vmatprep.subr.mxu0 0.0
    %992 = vmatpush1.msra.mxu0 0.0
    %993 = vmatprep.subr.mxu0 0.0
    %994 = vmatpush1.msra.mxu0 0.0
    %995 = vmatprep.subr.mxu0 0.0
    %996 = vmatpush1.msra.mxu0 0.0
    %997 = vmatprep.subr.mxu0 0.0
    %998 = vmatpush1.msra.mxu0 0.0
    %999 = vmatprep.subr.mxu0 0.0
    %1000 = vmatpush1.msra.mxu0 0.0
    %1001 = vmatprep.subr.mxu0 0.0
    %1002 = vmatpush1.msra.mxu0 0.0
    %1003 = vmatprep.subr.mxu0 0.0
    %1004 = vmatpush1.msra.mxu0 0.0
    %1005 = vmatprep.subr.mxu0 0.0
    %1006 = vmatpush1.msra.mxu0 0.0
    %1007 = vmatprep.subr.mxu0 0.0
    %1008 = vmatpush1.msra.mxu0 0.0
    %1009 = vmatprep.subr.mxu0 0.0
    %1010 = vmatpush1.msra.mxu0 0.0
    %1011 = vmatprep.subr.mxu0 0.0
    %1012 = vmatpush1.msra.mxu0 0.0
    %1013 = vmatprep.subr.mxu0 0.0
    %1014 = vmatpush1.msra.mxu0 0.0
    %1015 = vmatprep.subr.mxu0 0.0
    %1016 = vmatpush1.msra.mxu0 0.0
    %1017 = vmatprep.subr.mxu0 0.0
    %1018 = vmatpush1.msra.mxu0 0.0
    %1019 = vmatprep.subr.mxu0 0.0
    %1020 = vmatpush1.msra.mxu0 0.0
    %1021 = vmatprep.subr.mxu0 0.0
    %1022 = vmatpush1.msra.mxu0 0.0
    %1023 = vmatprep.subr.mxu0 0.0
    %1024 = vmatpush1.msra.mxu0 0.0
    %1025 = vmatprep.subr.mxu0 0.0
    %1026 = vmatpush1.msra.mxu0 0.0
    %1027 = vmatprep.subr.mxu0 0.0
    %1028 = vmatpush1.msra.mxu0 0.0
    %1029 = vmatprep.mubr.f32.mxu0 0.0
    %v1030 = vand.u32 %v549, 4294901760
    %1031 = vmatmul.mubr.f32.gmra.mrb[0].mxu0 %v1030
    %v1032 = vpop.f32.mrb[0].mxu0
    %v1033 = vadd.f32 %v958, %v1032
    %v1034 = vpop.f32.mrb[0].mxu0
    %1035 = vdwg.mxu0
    %1036 = vst.msk [vmem:[#allocation8] sm:$0xff] %vm547, %v1033
    // Predicated region
    $region34: #{tpu_custom_call.1} parent=1 // pred_check
      _
    $region35: #{tpu_custom_call.1} parent=1 // pred_check_branch
      %1038 = sbr.rel (0) target = $region37
    $region36: #{tpu_custom_call.1} parent=1 // pred_region
      %s1040 = ssub.s32 128, 128
      %1041 = vsyncadd [#allocation4], %s1040
      %s1043 = sshll.u32 [#allocation8], 4
      %s1044 = int_to_ptr.vmem [resolvable:$true] %s1043
      %1046 = dma.vmem_to_hbm [thread:$0]  %s1044, 128, %s5, [#allocation4]
    $region37: #{tpu_custom_call.1} parent=1 // pred_fallthru
      _
    // Predicated region
    $region38: #{tpu_custom_call.1} parent=1 // pred_check
      _
    $region39: #{tpu_custom_call.1} parent=1 // pred_check_branch
      %1048 = sbr.rel (0) target = $region41
    $region40: #{tpu_custom_call.1} parent=1 // pred_region
      %1049 = dma.done [#allocation4], 128
    $region41: #{tpu_custom_call.1} parent=1 // pred_fallthru
      _
    %1050 = vsyncpa [#allocation3], 1
    %1051 = vsyncpa [#allocation6], 1
    %1052 = vsyncpa [#allocation4], 1

</llo_original>
